<compile_context>
chip_gen: v7x
topology: tpu7x:2x2x1
jax: 0.10.0
libtpu: 0.0.40
codegen_flags: <defaults>
</compile_context>

<pallas_src>
import jax
import jax.numpy as jnp
from jax.experimental import pallas as pl
from jax.experimental.pallas import tpu as pltpu


def _masked_mse_kernel(n_frames_ref, pred_ref, true_ref, out_ref, acc_ref):
    """Grid = (batch i [parallel], T-tile k [arbitrary, reduction axis]).

    Per step: load a lane-dense (C, Tt) tile of pred/true, mask frames >= n_frames[i]
    (mask built from a (1, Tt) iota, broadcast over C), tree-reduce the squared
    diffs of this tile, and accumulate the partial sum into a tiny (1, 1) VMEM
    scalar accumulator. On the last T tile, divide by C * n_frames[i] and emit the
    per-sample loss into a lane-dense (8, 128) output block (single unmasked vst).
    """
    i = pl.program_id(0)
    k = pl.program_id(1)
    nk = pl.num_programs(1)

    nf = n_frames_ref[i]                      # int32 scalar, pre-clamped to [1, T]

    p = pred_ref[...]                         # (C, Tt) — batch dim squeezed by BlockSpec
    t = true_ref[...]
    C, Tt = p.shape

    # Frame mask: (1, Tt) iota broadcast across C via jnp.where (no full (C, Tt) iota).
    col = jax.lax.broadcasted_iota(jnp.int32, (1, Tt), 1) + k * Tt
    d = p - t
    d2 = jnp.where(col < nf, d * d, 0.0)      # also zeroes any grid-padding garbage

    # Tree-reduce this tile (VPU adds + one XLU reduce; XLU slot is free filler
    # in this mem-bound kernel) -> (1, 1) partial sum.
    tile_sum = jnp.sum(d2, axis=(0, 1), keepdims=True)

    @pl.when(k == 0)
    def _():
        acc_ref[...] = jnp.zeros_like(acc_ref)

    acc_ref[...] += tile_sum                  # (1, 1) running sum across T tiles

    @pl.when(k == nk - 1)
    def _():
        denom = jnp.float32(C) * nf.astype(jnp.float32)
        sample_loss = jnp.sum(acc_ref[...]) / denom
        out_ref[...] = jnp.full(out_ref.shape, sample_loss, dtype=out_ref.dtype)


def _pick_tile_t(C, T):
    # Lane-dense T tiles (multiple of 128), capped so one (C, Tt) f32 block stays
    # around <= 6 MiB. Live VMEM is then 2 inputs x double-buffer = 4 blocks
    # (~24 MiB) + tiny scratch/output, comfortably inside v7x's 64 MiB VMEM
    # (and far under v5e/v6e's 128 MiB). Measured HBM roofline saturates around
    # 512-2048 lanes, so these tiles are already in the flat part of the curve.
    max_elems = (6 * 1024 * 1024) // 4        # ~1.5M f32 per block
    if C * T <= max_elems or T <= 128:
        return T                              # whole-T block (full-dim blocks always legal)
    tt = max(128, ((max_elems // C) // 128) * 128)
    return min(tt, T)


@jax.jit
def masked_bm_loss(pred, true, n_frames):
    B, C, T = pred.shape
    Tt = _pick_tile_t(C, T)
    nk = pl.cdiv(T, Tt)

    # nf > T behaves like PyTorch's [:frame] slice (caps at T); nf == 0 would be an
    # empty mean (NaN in PyTorch) — clamp to 1 to keep the batch mean finite.
    # TODO(synk): emit NaN for n_frames == 0 if bit-exact parity with PyTorch is required.
    nf = jnp.clip(n_frames.astype(jnp.int32), 1, T)

    tile_bytes = C * Tt * 4
    # 2 inputs x double-buffer = 4 live blocks, plus ~2 MiB headroom for the
    # (1,1) scratch, (8,128) output and pipeline bookkeeping.
    vmem_limit = int(min(48 * 1024 * 1024,
                         max(8 * 1024 * 1024, 4 * tile_bytes + (2 << 20))))

    out = pl.pallas_call(
        _masked_mse_kernel,
        out_shape=jax.ShapeDtypeStruct((B, 8, 128), jnp.float32),
        grid_spec=pltpu.PrefetchScalarGridSpec(
            num_scalar_prefetch=1,
            grid=(B, nk),
            in_specs=[
                pl.BlockSpec((None, C, Tt), lambda i, k, nf_ref: (i, 0, k)),
                pl.BlockSpec((None, C, Tt), lambda i, k, nf_ref: (i, 0, k)),
            ],
            # One lane-dense (8, 128) block per sample; written once on the last T tile.
            out_specs=pl.BlockSpec((None, 8, 128), lambda i, k, nf_ref: (i, 0, 0)),
            scratch_shapes=[pltpu.VMEM((1, 1), jnp.float32)],
        ),
        compiler_params=pltpu.CompilerParams(
            # batch axis parallel (v7x megacore can split it); T reduction axis sequential
            dimension_semantics=("parallel", "arbitrary"),
            vmem_limit_bytes=vmem_limit,
        ),
    )(nf, pred, true)

    per_sample = out[:, 0, 0]                 # (B,) per-sample losses
    return jnp.mean(per_sample)               # batch mean in plain JAX


def _reference(pred, true, n_frames):
    # Pure-JAX reference matching the PyTorch loop semantics.
    losses = []
    for i in range(pred.shape[0]):
        f = int(n_frames[i])
        d = pred[i, :, :f] - true[i, :, :f]
        losses.append(jnp.mean(d * d))
    return jnp.mean(jnp.stack(losses))


if __name__ == "__main__":
    key = jax.random.PRNGKey(0)
    k1, k2 = jax.random.split(key)

    B, C, T = 2, 4, 16
    pred = jax.random.normal(k1, (B, C, T), dtype=jnp.float32)
    true = jax.random.normal(k2, (B, C, T), dtype=jnp.float32)
    n_frames = jnp.array([10, 16], dtype=jnp.int32)

    out = masked_bm_loss(pred, true, n_frames)
    out = jax.block_until_ready(out)

    ref = _reference(pred, true, n_frames)
    assert jnp.allclose(out, ref, rtol=1e-5, atol=1e-5), (out, ref)

    print("KERNEL_OK")
</pallas_src>

<mosaic_0001>
module attributes {stable_mosaic.version = 11 : i64} {
  func.func @_masked_mse_kernel(%arg0: i32, %arg1: i32, %arg2: memref<2xi32, #tpu.memory_space<smem>>, %arg3: memref<1x4x16xf32, #tpu.memory_space<vmem>>, %arg4: memref<1x4x16xf32, #tpu.memory_space<vmem>>, %arg5: memref<1x8x128xf32, #tpu.memory_space<vmem>>, %arg6: memref<1x1xf32, #tpu.memory_space<vmem>>) attributes {dimension_semantics = [#tpu.dimension_semantics<parallel>, #tpu.dimension_semantics<arbitrary>], iteration_bounds = array<i64: 2, 1>, scalar_prefetch = 1 : i64, scratch_operands = 1 : i64, tpu.core_type = #tpu.core_type<tc>, window_params = [{transform_indices = @transform_0, window_bounds = array<i64: 1, 4, 16>}, {transform_indices = @transform_1, window_bounds = array<i64: 1, 4, 16>}, {transform_indices = @transform_2, window_bounds = array<i64: 1, 8, 128>}]} {
    %0 = arith.index_cast %arg0 : i32 to index
    %1 = memref.load %arg2[%0] : memref<2xi32, #tpu.memory_space<smem>>
    %c0 = arith.constant 0 : index
    %c0_0 = arith.constant 0 : index
    %c0_1 = arith.constant 0 : index
    %2 = vector.load %arg3[%c0, %c0_0, %c0_1] : memref<1x4x16xf32, #tpu.memory_space<vmem>>, vector<1x4x16xf32>
    %3 = vector.shape_cast %2 : vector<1x4x16xf32> to vector<4x16xf32>
    %c0_2 = arith.constant 0 : index
    %c0_3 = arith.constant 0 : index
    %c0_4 = arith.constant 0 : index
    %4 = vector.load %arg4[%c0_2, %c0_3, %c0_4] : memref<1x4x16xf32, #tpu.memory_space<vmem>>, vector<1x4x16xf32>
    %5 = vector.shape_cast %4 : vector<1x4x16xf32> to vector<4x16xf32>
    %6 = tpu.iota {dimensions = array<i32: 1>} : vector<1x16xi32>
    %c16_i32 = arith.constant 16 : i32
    %7 = arith.muli %arg1, %c16_i32 : i32
    %8 = vector.broadcast %7 : i32 to vector<1x16xi32>
    %9 = arith.addi %6, %8 : vector<1x16xi32>
    %10 = arith.subf %3, %5 : vector<4x16xf32>
    %11 = vector.broadcast %1 : i32 to vector<1x16xi32>
    %12 = arith.cmpi slt, %9, %11 : vector<1x16xi32>
    %13 = arith.mulf %10, %10 : vector<4x16xf32>
    %cst = arith.constant 0.000000e+00 : f32
    %14 = vector.shape_cast %12 : vector<1x16xi1> to vector<1x16xi1>
    %15 = vector.broadcast %14 : vector<1x16xi1> to vector<4x16xi1>
    %16 = vector.broadcast %cst : f32 to vector<4x16xf32>
    %17 = arith.select %15, %13, %16 : vector<4x16xi1>, vector<4x16xf32>
    %18 = vector.shape_cast %17 : vector<4x16xf32> to vector<1x4x16xf32>
    %cst_5 = arith.constant dense<0.000000e+00> : vector<1xf32>
    %19 = vector.multi_reduction <add>, %18, %cst_5 [1, 2] : vector<1x4x16xf32> to vector<1xf32>
    %20 = vector.shape_cast %19 : vector<1xf32> to vector<1x1x1xf32>
    %21 = vector.extract %20[0, 0, 0] : f32 from vector<1x1x1xf32>
    %22 = vector.broadcast %21 : f32 to vector<1x1xf32>
    %c0_i32 = arith.constant 0 : i32
    %23 = arith.cmpi eq, %arg1, %c0_i32 : i32
    %24 = arith.extui %23 : i1 to i32
    %c0_i32_6 = arith.constant 0 : i32
    %25 = arith.cmpi ne, %24, %c0_i32_6 : i32
    scf.if %25 {
      %cst_13 = arith.constant 0.000000e+00 : f32
      %32 = vector.broadcast %cst_13 : f32 to vector<1x1xf32>
      %c0_14 = arith.constant 0 : index
      %c0_15 = arith.constant 0 : index
      %33 = vector.load %arg6[%c0_14, %c0_15] : memref<1x1xf32, #tpu.memory_space<vmem>>, vector<1x1xf32>
      tpu.vector_store %arg6[%c0_14, %c0_15], %32 {strides = array<i32>} : memref<1x1xf32, #tpu.memory_space<vmem>>, vector<1x1xf32>,
    } else {
    }
    %c0_7 = arith.constant 0 : index
    %c0_8 = arith.constant 0 : index
    %26 = vector.load %arg6[%c0_7, %c0_8] : memref<1x1xf32, #tpu.memory_space<vmem>>, vector<1x1xf32>
    %27 = arith.addf %26, %22 : vector<1x1xf32>
    %c0_9 = arith.constant 0 : index
    %c0_10 = arith.constant 0 : index
    %28 = vector.load %arg6[%c0_9, %c0_10] : memref<1x1xf32, #tpu.memory_space<vmem>>, vector<1x1xf32>
    tpu.vector_store %arg6[%c0_9, %c0_10], %27 {strides = array<i32>} : memref<1x1xf32, #tpu.memory_space<vmem>>, vector<1x1xf32>,
    %c0_i32_11 = arith.constant 0 : i32
    %29 = arith.cmpi eq, %arg1, %c0_i32_11 : i32
    %30 = arith.extui %29 : i1 to i32
    %c0_i32_12 = arith.constant 0 : i32
    %31 = arith.cmpi ne, %30, %c0_i32_12 : i32
    scf.if %31 {
      %32 = arith.sitofp %1 : i32 to f32
      %cst_13 = arith.constant 4.000000e+00 : f32
      %33 = arith.mulf %cst_13, %32 : f32
      %c0_14 = arith.constant 0 : index
      %c0_15 = arith.constant 0 : index
      %34 = vector.load %arg6[%c0_14, %c0_15] : memref<1x1xf32, #tpu.memory_space<vmem>>, vector<1x1xf32>
      %35 = vector.shape_cast %34 : vector<1x1xf32> to vector<1x1x1xf32>
      %cst_16 = arith.constant dense<0.000000e+00> : vector<1xf32>
      %36 = vector.multi_reduction <add>, %35, %cst_16 [1, 2] : vector<1x1x1xf32> to vector<1xf32>
      %37 = vector.shape_cast %36 : vector<1xf32> to vector<1x1x1xf32>
      %38 = vector.extract %37[0, 0, 0] : f32 from vector<1x1x1xf32>
      %39 = arith.divf %38, %33 : f32
      %40 = vector.broadcast %39 : f32 to vector<8x128xf32>
      %c0_17 = arith.constant 0 : index
      %c0_18 = arith.constant 0 : index
      %c0_19 = arith.constant 0 : index
      %41 = vector.load %arg5[%c0_17, %c0_18, %c0_19] : memref<1x8x128xf32, #tpu.memory_space<vmem>>, vector<1x8x128xf32>
      %42 = vector.shape_cast %41 : vector<1x8x128xf32> to vector<8x128xf32>
      %43 = vector.shape_cast %40 : vector<8x128xf32> to vector<1x8x128xf32>
      tpu.vector_store %arg5[%c0_17, %c0_18, %c0_19], %43 {strides = array<i32>} : memref<1x8x128xf32, #tpu.memory_space<vmem>>, vector<1x8x128xf32>,
    } else {
    }
    return
  }
  func.func @transform_0(%arg0: i32, %arg1: i32, %arg2: memref<2xi32, #tpu.memory_space<smem>>) -> (i32, i32, i32) {
    %c0_i32 = arith.constant 0 : i32
    %c0_i32_0 = arith.constant 0 : i32
    return %arg0, %c0_i32, %arg1 : i32, i32, i32
  }
  func.func @transform_1(%arg0: i32, %arg1: i32, %arg2: memref<2xi32, #tpu.memory_space<smem>>) -> (i32, i32, i32) {
    %c0_i32 = arith.constant 0 : i32
    %c0_i32_0 = arith.constant 0 : i32
    return %arg0, %c0_i32, %arg1 : i32, i32, i32
  }
  func.func @transform_2(%arg0: i32, %arg1: i32, %arg2: memref<2xi32, #tpu.memory_space<smem>>) -> (i32, i32, i32) {
    %c0_i32 = arith.constant 0 : i32
    %c0_i32_0 = arith.constant 0 : i32
    %c0_i32_1 = arith.constant 0 : i32
    return %arg0, %c0_i32, %c0_i32_0 : i32, i32, i32
  }
}

</mosaic_0001>

<llo_original>
// kernel: masked_bm_loss.1
$region0: #{masked_bm_loss.1}
  #allocation0 [shape = 'u32[]', space=smem, size = 0x4, offset = 0x4, fixed_abs, tag = 'smem constant byte address 0x4 - core index']
  #allocation1 [shape = 'u32[144,128]{1,0:T(1,128)}', space=vmem, size = 0x12000, scoped, tag = 'internal scratch']
  #allocation2 [shape = 'f32[1,1]{1,0:T(1,128)}', space=vmem, size = 0x200, scoped, tag = 'scratch operand']
  #allocation3 [shape = 's32[1]{0}', space=sflag, size = 0x4, scoped, tag = 'scoped memory for masked_bm_loss.1']
  #allocation4 [shape = 'u8[512]{0}', space=smem, size = 0x200, scoped, tag = 'prefetched SMEM operand 0']
  %s0 = inlined_call_operand.vmem [shape: s32[2], index: 0, kind: input, shape index: {}]
  %s1 = inlined_call_operand.hbm [shape: f32[2,4,16], index: 1, kind: input, shape index: {}]
  %s2 = inlined_call_operand.hbm [shape: f32[2,4,16], index: 2, kind: input, shape index: {}]
  %s3 = inlined_call_operand.vmem [shape: f32[2,8,128], index: 3, kind: output, shape index: {}]
  %s4 = sld [smem:[#allocation0]]
  $region57: #{masked_bm_loss.1} parent=0
    _
  %s6 = ssub.s32 1, %s4
  %s7 = scalar_select 0, %s6, %s4
  %s8 = sshll.u32 %s0, 4
  %s9 = int_to_ptr.vmem [resolvable:$true] %s8
  %11 = dma.vmem_to_smem %s9, 16, [#allocation4], [#allocation3]
  %12 = dma.done [#allocation3], 16
  %13 = sfence
  $region1: #{masked_bm_loss.1} parent=0
    #allocation5 [shape = 'u8[4096]{0}', space=vmem, size = 0x1000, scoped, tag = 'input window, operand 1']
    #allocation6 [shape = 's32[2]{0}', space=sflag, size = 0x8, scoped, tag = 'scoped memory for masked_bm_loss.1']
    #allocation7 [shape = 'u8[4096]{0}', space=vmem, size = 0x1000, scoped, tag = 'input window, operand 2']
    #allocation8 [shape = 's32[2]{0}', space=sflag, size = 0x8, scoped, tag = 'scoped memory for masked_bm_loss.1']
    %14 = vsyncpa [#allocation6], 0
    %s15 = scalar_lea.sflag [#allocation6], 1
    %16 = vsyncpa %s15, 0
    %17 = vsyncpa [#allocation8], 0
    %s18 = scalar_lea.sflag [#allocation8], 1
    %19 = vsyncpa %s18, 0
    loop: start=0, step=1, limit=4
    $region2: #{masked_bm_loss.1} parent=1 // loop_pre_header
      _
    $region3: #{masked_bm_loss.1} parent=1 // loop_header
      %s21 = sphi 0, %s25
      %p22 = scmp.ge.s32.totalorder %s21, 4
      %s28 = sphi 0, %s40
      %s29 = sphi 0, %s36
      %s30 = sphi 0, %s28
      %s31 = sphi 0, %s29
      %s32 = sphi 0, %s30
      %s33 = sphi 0, %s31
      %s45 = sphi 0, %s47
      %s48 = sphi 0, %s45
      %s49 = sphi 0, %s48
      %s65 = sphi 0, %s49
      %s73 = sphi 0, %s75
      %s76 = sphi 0, %s73
      %s77 = sphi 0, %s76
      %s93 = sphi 0, %s77
      %s99 = sphi 0, %s101
      %s102 = sphi 0, %s99
      %s103 = sphi 0, %s102
      %s119 = sphi 0, %s103
    $region4: #{masked_bm_loss.1} parent=1 // loop_header_branch
      %24 = sbr.rel (%p22) target = $region8
    $region5: #{masked_bm_loss.1} parent=1 // loop_body
      %s26 = ssub.s32 %s21, 1
      %s27 = ssub.s32 %s21, 2
      %s34 = sadd.s32 1, %s29
      %p35 = scmp.ge.s32.totalorder %s34, 1
      %s36 = scalar_select %p35, 0, %s34
      %s37 = sadd.s32 1, %s28
      %s38 = scalar_select %p35, %s37, %s28
      %p39 = scmp.ge.s32.totalorder %s38, 2
      %s40 = scalar_select %p39, 0, %s38
      %s41 = ssub.s32 %s28, %s40
      %s42 = ssub.s32 %s29, %s36
      %s43 = sor.u32 %s41, %s42
      %p44 = scmp.eq.s32.totalorder %s43, 0
      %s46 = sadd.s32 %s45, 1
      %s47 = scalar_select %p44, %s45, %s46
      %p50 = pneg %p44
      %p51 = scmp.eq.s32.totalorder %s21, 1
      %p52 = por %p50, %p51
      %p53 = scmp.ne.s32.totalorder %s45, %s48
      %p54 = scmp.eq.s32.totalorder %s21, 0
      %p55 = por %p53, %p54
      %p56 = scmp.ne.s32.totalorder %s45, %s48
      %p57 = scmp.eq.s32.totalorder %s26, 1
      %p58 = por %p56, %p57
      %p59 = scmp.ne.s32.totalorder %s48, %s49
      %p60 = scmp.eq.s32.totalorder %s26, 0
      %p61 = por %p59, %p60
      %p62 = scmp.ne.s32.totalorder %s48, %s49
      %p63 = scmp.eq.s32.totalorder %s27, 1
      %p64 = por %p62, %p63
      %p66 = scmp.ne.s32.totalorder %s49, %s65
      %p67 = scmp.eq.s32.totalorder %s27, 0
      %p68 = por %p66, %p67
      %s69 = ssub.s32 %s28, %s40
      %s70 = ssub.s32 %s29, %s36
      %s71 = sor.u32 %s69, %s70
      %p72 = scmp.eq.s32.totalorder %s71, 0
      %s74 = sadd.s32 %s73, 1
      %s75 = scalar_select %p72, %s73, %s74
      %p78 = pneg %p72
      %p79 = scmp.eq.s32.totalorder %s21, 1
      %p80 = por %p78, %p79
      %p81 = scmp.ne.s32.totalorder %s73, %s76
      %p82 = scmp.eq.s32.totalorder %s21, 0
      %p83 = por %p81, %p82
      %p84 = scmp.ne.s32.totalorder %s73, %s76
      %p85 = scmp.eq.s32.totalorder %s26, 1
      %p86 = por %p84, %p85
      %p87 = scmp.ne.s32.totalorder %s76, %s77
      %p88 = scmp.eq.s32.totalorder %s26, 0
      %p89 = por %p87, %p88
      %p90 = scmp.ne.s32.totalorder %s76, %s77
      %p91 = scmp.eq.s32.totalorder %s27, 1
      %p92 = por %p90, %p91
      %p94 = scmp.ne.s32.totalorder %s77, %s93
      %p95 = scmp.eq.s32.totalorder %s27, 0
      %p96 = por %p94, %p95
      %s97 = ssub.s32 %s28, %s40
      %p98 = scmp.eq.s32.totalorder %s97, 0
      %s100 = sadd.s32 %s99, 1
      %s101 = scalar_select %p98, %s99, %s100
      %p104 = pneg %p98
      %p105 = scmp.eq.s32.totalorder %s21, 1
      %p106 = por %p104, %p105
      %p107 = scmp.ne.s32.totalorder %s99, %s102
      %p108 = scmp.eq.s32.totalorder %s21, 0
      %p109 = por %p107, %p108
      %p110 = scmp.ne.s32.totalorder %s99, %s102
      %p111 = scmp.eq.s32.totalorder %s26, 1
      %p112 = por %p110, %p111
      %p113 = scmp.ne.s32.totalorder %s102, %s103
      %p114 = scmp.eq.s32.totalorder %s26, 0
      %p115 = por %p113, %p114
      %p116 = scmp.ne.s32.totalorder %s102, %s103
      %p117 = scmp.eq.s32.totalorder %s27, 1
      %p118 = por %p116, %p117
      %p120 = scmp.ne.s32.totalorder %s103, %s119
      %p121 = scmp.eq.s32.totalorder %s27, 0
      %p122 = por %p120, %p121
      %p123 = scmp.le.s32.totalorder 1, %s21
      %p124 = scmp.lt.s32.totalorder %s21, 3
      %p125 = pnand %p123, %p124
      %p126 = pneg %p125
      // Predicated region
      $region9: #{masked_bm_loss.1} parent=5 // pred_check
        _
      $region10: #{masked_bm_loss.1} parent=5 // pred_check_branch
        %128 = sbr.rel (%p125) target = $region12
      $region11: #{masked_bm_loss.1} parent=5 // pred_region
        %s129 = ssub.s32 %s21, 1
      $region12: #{masked_bm_loss.1} parent=5 // pred_fallthru
        _
      %p130 = scmp.lt.s32.totalorder %s21, 2
      // Predicated region
      $region13: #{masked_bm_loss.1} parent=5 // pred_check
        %p131 = pneg %p130
      $region14: #{masked_bm_loss.1} parent=5 // pred_check_branch
        %133 = sbr.rel (%p131) target = $region16
      $region15: #{masked_bm_loss.1} parent=5 // pred_region
        // Predicated region
        $region17: #{masked_bm_loss.1} parent=15 // pred_check
          %p134 = pneg %p55
        $region18: #{masked_bm_loss.1} parent=15 // pred_check_branch
          %136 = sbr.rel (%p134) target = $region20
        $region19: #{masked_bm_loss.1} parent=15 // pred_region
          %s137 = sand.u32 %s45, 1
          %s138 = scalar_lea.sflag [#allocation6], %s137
          %s139 = sand.u32 %s45, 1
          %s140 = smul.addr %s139, 4
          %s141 = scalar_lea.vmem [#allocation5], %s140
          %s143 = ssub.s32 64, 64
          %144 = vsyncadd %s138, %s143
          %s145 = sadd.s32 %s29, %s28
          %s146 = smul.addr %s145, 64
          %s147 = scalar_lea.hbm %s1, %s146
          %s149 = sshll.u32 %s141, 4
          %s150 = int_to_ptr.vmem [resolvable:$true] %s149
          %152 = dma.hbm_to_vmem [thread:$0]  %s147, 64, %s150, %s138
        $region20: #{masked_bm_loss.1} parent=15 // pred_fallthru
          _
        // Predicated region
        $region21: #{masked_bm_loss.1} parent=15 // pred_check
          %p153 = pneg %p83
        $region22: #{masked_bm_loss.1} parent=15 // pred_check_branch
          %155 = sbr.rel (%p153) target = $region24
        $region23: #{masked_bm_loss.1} parent=15 // pred_region
          %s156 = sand.u32 %s73, 1
          %s157 = scalar_lea.sflag [#allocation8], %s156
          %s158 = sand.u32 %s73, 1
          %s159 = smul.addr %s158, 4
          %s160 = scalar_lea.vmem [#allocation7], %s159
          %s162 = ssub.s32 64, 64
          %163 = vsyncadd %s157, %s162
          %s164 = sadd.s32 %s29, %s28
          %s165 = smul.addr %s164, 64
          %s166 = scalar_lea.hbm %s2, %s165
          %s168 = sshll.u32 %s160, 4
          %s169 = int_to_ptr.vmem [resolvable:$true] %s168
          %171 = dma.hbm_to_vmem [thread:$0]  %s166, 64, %s169, %s157
        $region24: #{masked_bm_loss.1} parent=15 // pred_fallthru
          _
      $region16: #{masked_bm_loss.1} parent=5 // pred_fallthru
        _
      %p172 = scmp.le.s32.totalorder 1, %s21
      %p173 = scmp.lt.s32.totalorder %s21, 3
      %p174 = pnand %p172, %p173
      %p175 = pneg %p174
      // Predicated region
      $region25: #{masked_bm_loss.1} parent=5 // pred_check
        _
      $region26: #{masked_bm_loss.1} parent=5 // pred_check_branch
        %177 = sbr.rel (%p174) target = $region28
      $region27: #{masked_bm_loss.1} parent=5 // pred_region
        %s178 = ssub.s32 %s21, 1
        %s179 = sand.u32 %s48, 1
        %s180 = scalar_lea.sflag [#allocation6], %s179
        %s181 = sand.u32 %s48, 1
        %s182 = smul.addr %s181, 4
        %s183 = scalar_lea.vmem [#allocation5], %s182
        // Predicated region
        $region29: #{masked_bm_loss.1} parent=27 // pred_check
          %p184 = pneg %p61
        $region30: #{masked_bm_loss.1} parent=27 // pred_check_branch
          %186 = sbr.rel (%p184) target = $region32
        $region31: #{masked_bm_loss.1} parent=27 // pred_region
          %187 = dma.done %s180, 64
        $region32: #{masked_bm_loss.1} parent=27 // pred_fallthru
          _
        %s188 = sand.u32 %s76, 1
        %s189 = scalar_lea.sflag [#allocation8], %s188
        %s190 = sand.u32 %s76, 1
        %s191 = smul.addr %s190, 4
        %s192 = scalar_lea.vmem [#allocation7], %s191
        // Predicated region
        $region33: #{masked_bm_loss.1} parent=27 // pred_check
          %p193 = pneg %p89
        $region34: #{masked_bm_loss.1} parent=27 // pred_check_branch
          %195 = sbr.rel (%p193) target = $region36
        $region35: #{masked_bm_loss.1} parent=27 // pred_region
          %196 = dma.done %s189, 64
        $region36: #{masked_bm_loss.1} parent=27 // pred_fallthru
          _
        %s197 = sand.u32 %s48, 1
        %s198 = scalar_lea.sflag [#allocation6], %s197
        %s199 = sand.u32 %s48, 1
        %s200 = smul.addr %s199, 4
        %s201 = scalar_lea.vmem [#allocation5], %s200
        %p202 = pneg %p61
        %p203 = pneg %p58
        %s204 = sand.u32 %s76, 1
        %s205 = scalar_lea.sflag [#allocation8], %s204
        %s206 = sand.u32 %s76, 1
        %s207 = smul.addr %s206, 4
        %s208 = scalar_lea.vmem [#allocation7], %s207
        %p209 = pneg %p89
        %p210 = pneg %p86
        %p211 = pneg %p115
        %p212 = pneg %p112
        %p213 = scmp.lt.s32.totalorder %s30, 1
        %s214 = scalar_select %p213, %s30, 1
        %s215 = smul.addr %s214, 8
        %s216 = scalar_lea.vmem %s3, %s215
        %p217 = scmp.lt.s32.totalorder %s30, 1
        %s218 = scalar_select %p217, %s30, 1
        %s219 = smul.addr %s218, 8
        %s220 = scalar_lea.vmem %s3, %s219
        %s221 = sld [smem:[#allocation4 + %s30]]
        %v222 = vld [vmem:[%s183] sm:$0xf]
        %v223 = vld [vmem:[%s192] sm:$0xf]
        %v224 = vlaneseq
        %v225 = vand.u32 %v224, 127
        %s226 = smul.u32 %s31, 16
        %v227 = vstv %s226
        %v228 = vadd.s32 %v225, %v227
        %v229 = vsub.f32 %v222, %v223
        %v230 = vstv %s221
        %vm231 = vcmp.lt.s32.totalorder %v228, %v230
        %v232 = vmul.f32 %v229, %v229
        %v233 = vsel %vm231, 1, 0
        %vm234 = vcmp.eq.s32.totalorder %v233, 1
        %v235 = vsel %vm234, %v232, 0.0
        %vm236 = vcmask 125952
        %v237 = vsel %vm236, %v235, 0.0
        %238 = vadd.xlane.f32.xlu0 %v237
        %v239 = vpop.xlane.xlu0 %238
        %v240 = vrot.slane %v239, 4
        %v241 = vadd.f32 %v239, %v240
        %v242 = vrot.slane %v241, 2
        %v243 = vadd.f32 %v241, %v242
        %v244 = vrot.slane %v243, 1
        %v245 = vadd.f32 %v243, %v244
        %s246 = vtos %v245
        %v247 = vstv %s246
        %p248 = scmp.eq.s32.totalorder %s31, 0
        // Predicated region
        $region37: #{masked_bm_loss.1} parent=27 // pred_check
          %p249 = pneg %p248
        $region38: #{masked_bm_loss.1} parent=27 // pred_check_branch
          %251 = sbr.rel (%p249) target = $region40
        $region39: #{masked_bm_loss.1} parent=27 // pred_region
          %vm252 = vcmask 0
          %253 = vst.msk [vmem:[#allocation2] sm:$0x1] %vm252, 0.0
        $region40: #{masked_bm_loss.1} parent=27 // pred_fallthru
          _
        %v254 = vld [vmem:[#allocation2] sm:$0x1]
        %v255 = vadd.f32 %v254, %v247
        %vm256 = vcmask 0
        %257 = vst.msk [vmem:[#allocation2] sm:$0x1] %vm256, %v255
        // Predicated region
        $region41: #{masked_bm_loss.1} parent=27 // pred_check
          %p258 = pneg %p248
        $region42: #{masked_bm_loss.1} parent=27 // pred_check_branch
          %260 = sbr.rel (%p258) target = $region44
        $region43: #{masked_bm_loss.1} parent=27 // pred_region
          %s261 = scvt.s32.f32 %s221
          %s262 = smul.f32 %s261, 4.0
          %v263 = vld [vmem:[#allocation2] sm:$0x1]
          %v264 = vadd.f32 %v263, 0.0
          %s265 = vtos %v264
          %v266 = vstv %s262
          %v267 = vrcp.pop %v266
          %s268 = vtos %v267
          %s269 = smul.f32 %s265, %s268
          %v270 = vstv %s269
          %271 = vst [vmem:[%s220] sm:$0xff] %v270
        $region44: #{masked_bm_loss.1} parent=27 // pred_fallthru
          _
        %p272 = scmp.lt.s32.totalorder %s30, 1
        %s273 = scalar_select %p272, %s30, 1
        %s274 = smul.addr %s273, 8
        %s275 = scalar_lea.vmem %s3, %s274
        // Predicated region
        $region45: #{masked_bm_loss.1} parent=27 // pred_check
          %p276 = pneg %p112
        $region46: #{masked_bm_loss.1} parent=27 // pred_check_branch
          %278 = sbr.rel (%p276) target = $region48
        $region47: #{masked_bm_loss.1} parent=27 // pred_region
          _
        $region48: #{masked_bm_loss.1} parent=27 // pred_fallthru
          _
      $region28: #{masked_bm_loss.1} parent=5 // pred_fallthru
        _
      %p279 = scmp.le.s32.totalorder 2, %s21
      // Predicated region
      $region49: #{masked_bm_loss.1} parent=5 // pred_check
        %p280 = pneg %p279
      $region50: #{masked_bm_loss.1} parent=5 // pred_check_branch
        %282 = sbr.rel (%p280) target = $region52
      $region51: #{masked_bm_loss.1} parent=5 // pred_region
        %s283 = ssub.s32 %s21, 2
        // Predicated region
        $region53: #{masked_bm_loss.1} parent=51 // pred_check
          %p284 = pneg %p118
        $region54: #{masked_bm_loss.1} parent=51 // pred_check_branch
          %286 = sbr.rel (%p284) target = $region56
        $region55: #{masked_bm_loss.1} parent=51 // pred_region
          %p287 = scmp.lt.s32.totalorder %s32, 1
          %s288 = scalar_select %p287, %s32, 1
          %s289 = smul.addr %s288, 8
          %s290 = scalar_lea.vmem %s3, %s289
        $region56: #{masked_bm_loss.1} parent=51 // pred_fallthru
          _
      $region52: #{masked_bm_loss.1} parent=5 // pred_fallthru
        _
    $region6: #{masked_bm_loss.1} parent=1 // loop_footer
      %s25 = sadd.s32 1, %s21
    $region7: #{masked_bm_loss.1} parent=1 // loop_footer_branch
      %20 = sbr.rel target = $region3
    $region8: #{masked_bm_loss.1} parent=1 // loop_exit
      _
    %291 = vsyncpa [#allocation6], 1
    %s292 = scalar_lea.sflag [#allocation6], 1
    %293 = vsyncpa %s292, 1
    %294 = vsyncpa [#allocation8], 1
    %s295 = scalar_lea.sflag [#allocation8], 1
    %296 = vsyncpa %s295, 1

</llo_original>
